<compile_context>
chip_gen: v6e
topology: v6e:2x2x1
jax: 0.10.0
libtpu: 0.0.40
codegen_flags: <defaults>
</compile_context>

<pallas_src>
import functools

import jax
import jax.numpy as jnp
from jax.experimental import pallas as pl
from jax.experimental.pallas import tpu as pltpu

_IN, _H1, _H2, _OUT = 8, 6, 4, 1
_LANES = 128


def _round_up(n, m):
    return ((n + m - 1) // m) * m


def _cdiv(a, b):
    return -(-a // b)


def _mlp_kernel(x_ref, w1_ref, b1_ref, w2_ref, b2_ref, w3_ref, b3_ref, o_ref):
    # x_ref: (8, S, 128) f32 VMEM block — feature-major, batch dense over
    #        (sublane, lane); every per-feature slice is a dense (S, 128) tile.
    # w*/b*: folded PyTorch-layout scalars in SMEM.
    # o_ref: (S, 128) f32 VMEM block — dense, unmasked full-width stores.
    x = [x_ref[k] for k in range(_IN)]              # 8 dense (S, 128) tiles

    # Layer 1 (8 -> 6): t1 = tanh(W1' x + b1')   (sigmoid affine folded away)
    t1 = []
    for j in range(_H1):
        acc = x[0] * w1_ref[j, 0]
        for k in range(1, _IN):
            acc = acc + x[k] * w1_ref[j, k]
        t1.append(jnp.tanh(acc + b1_ref[j]))

    # Layer 2 (6 -> 4): t2 = tanh(W2' t1 + b2')
    t2 = []
    for j in range(_H2):
        acc = t1[0] * w2_ref[j, 0]
        for k in range(1, _H1):
            acc = acc + t1[k] * w2_ref[j, k]
        t2.append(jnp.tanh(acc + b2_ref[j]))

    # Layer 3 (4 -> 1): only the final sigmoid's affine remains explicit.
    acc = t2[0] * w3_ref[0, 0]
    for k in range(1, _H2):
        acc = acc + t2[k] * w3_ref[0, k]
    o_ref[...] = (0.5 * jnp.tanh(acc + b3_ref[0]) + 0.5).astype(o_ref.dtype)


def _fold_params(params):
    """Fold sigmoid affines (0.5*tanh(0.5*z)+0.5) into the tiny weight matrices.

    h1 = sigmoid(W1 x + b1) = 0.5*(t1+1),  t1 = tanh(0.5*W1 x + 0.5*b1)
    h2 = 0.5*(t2+1),  t2 = tanh(0.25*W2 t1 + 0.5*b2 + 0.25*W2.sum(1))
    out = 0.5*tanh(0.25*W3 t2 + 0.5*b3 + 0.25*W3.sum(1)) + 0.5
    """
    w1, b1, w2, b2, w3, b3 = params
    w1f = 0.5 * w1
    b1f = 0.5 * b1
    w2f = 0.25 * w2
    b2f = 0.5 * b2 + 0.25 * jnp.sum(w2, axis=1)
    w3f = 0.25 * w3
    b3f = 0.5 * b3 + 0.25 * jnp.sum(w3, axis=1)
    return w1f, b1f, w2f, b2f, w3f, b3f


@functools.partial(jax.jit, static_argnames=("block_rows",))
def mlp_forward(x, params, *, block_rows=512):
    """x: (N, 8) float32 -> (N, 1) float32.  params are PyTorch-layout
    (w1(6,8), b1(6,), w2(4,6), b2(4,), w3(1,4), b3(1,))."""
    n = x.shape[0]
    nr = _cdiv(n, _LANES)            # batch folded into (nr, 128)
    n_pad = nr * _LANES

    # Pad only to a multiple of 128 (not the tile size), then present x in a
    # feature-major, batch-dense layout.  Under jit, pad + transpose + reshape
    # fuse into a single XLA copy pass.
    if n_pad != n:
        x = jnp.pad(x, ((0, n_pad - n), (0, 0)))
    xt = x.T.reshape(_IN, nr, _LANES)                # (8, nr, 128)

    # Tile over the folded-batch rows.  Multiple of 8 (sublane dense), capped
    # so the grid has >=2 steps whenever possible (v7x megacore).
    if nr <= 8:
        s_rows = nr                                  # single full-extent block
    else:
        cap = _round_up(max(block_rows, 8), 8)
        half = _round_up(_cdiv(nr, 2), 8)
        s_rows = max(8, min(cap, half))
    grid = (_cdiv(nr, s_rows),)

    smem = pl.BlockSpec(memory_space=pltpu.MemorySpace.SMEM)
    w1f, b1f, w2f, b2f, w3f, b3f = _fold_params(params)

    out = pl.pallas_call(
        _mlp_kernel,
        out_shape=jax.ShapeDtypeStruct((nr, _LANES), jnp.float32),
        grid=grid,
        in_specs=[
            pl.BlockSpec((_IN, s_rows, _LANES), lambda i: (0, i, 0)),  # x block
            smem, smem, smem, smem, smem, smem,                        # weights
        ],
        out_specs=pl.BlockSpec((s_rows, _LANES), lambda i: (i, 0)),
        compiler_params=pltpu.CompilerParams(
            dimension_semantics=("parallel",),       # split batch blocks on v7x
        ),
    )(xt, w1f, b1f, w2f, b2f, w3f, b3f)

    return out.reshape(-1)[:n].reshape(n, _OUT)


def init_params(key):
    """PyTorch default init U(-1/sqrt(fan_in), +1/sqrt(fan_in)), PyTorch layout."""
    def linear(key, fan_in, fan_out):
        kw, kb = jax.random.split(key)
        bound = 1.0 / jnp.sqrt(fan_in)
        w = jax.random.uniform(kw, (fan_out, fan_in), jnp.float32, -bound, bound)
        b = jax.random.uniform(kb, (fan_out,), jnp.float32, -bound, bound)
        return w, b

    k1, k2, k3 = jax.random.split(key, 3)
    w1, b1 = linear(k1, _IN, _H1)
    w2, b2 = linear(k2, _H1, _H2)
    w3, b3 = linear(k3, _H2, _OUT)
    return (w1, b1, w2, b2, w3, b3)


def reference_forward(x, params):
    w1, b1, w2, b2, w3, b3 = params
    h = jax.nn.sigmoid(x @ w1.T + b1)
    h = jax.nn.sigmoid(h @ w2.T + b2)
    return jax.nn.sigmoid(h @ w3.T + b3)


if __name__ == "__main__":
    key = jax.random.PRNGKey(0)
    kx, kp = jax.random.split(key)
    params = init_params(kp)

    # Small batch (non-multiple of 128 exercises the 128-pad + slice path).
    batch = 64
    x = jax.random.normal(kx, (batch, _IN), dtype=jnp.float32)
    out = mlp_forward(x, params)
    jax.block_until_ready(out)
    ref = reference_forward(x, params)
    assert out.shape == (batch, _OUT), out.shape
    assert jnp.allclose(out, ref, atol=1e-5, rtol=1e-5), "mismatch vs reference (small)"

    # Multi-block + ragged-tail path: nr = 17 rows -> 3 grid steps of 8/8/1 rows.
    batch2 = 2125
    x2 = jax.random.normal(jax.random.PRNGKey(1), (batch2, _IN), dtype=jnp.float32)
    out2 = mlp_forward(x2, params, block_rows=8)
    jax.block_until_ready(out2)
    ref2 = reference_forward(x2, params)
    assert out2.shape == (batch2, _OUT), out2.shape
    assert jnp.allclose(out2, ref2, atol=1e-5, rtol=1e-5), "mismatch vs reference (tiled)"

    # No-pad path (batch a multiple of 128), single block with default tile.
    batch3 = 1024
    x3 = jax.random.normal(jax.random.PRNGKey(2), (batch3, _IN), dtype=jnp.float32)
    out3 = mlp_forward(x3, params)
    jax.block_until_ready(out3)
    ref3 = reference_forward(x3, params)
    assert out3.shape == (batch3, _OUT), out3.shape
    assert jnp.allclose(out3, ref3, atol=1e-5, rtol=1e-5), "mismatch vs reference (aligned)"

    print("KERNEL_OK")
</pallas_src>

<mosaic_0001>
module attributes {stable_mosaic.version = 11 : i64} {
  func.func @_mlp_kernel(%arg0: i32, %arg1: memref<8x1x128xf32, #tpu.memory_space<vmem>>, %arg2: memref<6x8xf32, #tpu.memory_space<smem>>, %arg3: memref<6xf32, #tpu.memory_space<smem>>, %arg4: memref<4x6xf32, #tpu.memory_space<smem>>, %arg5: memref<4xf32, #tpu.memory_space<smem>>, %arg6: memref<1x4xf32, #tpu.memory_space<smem>>, %arg7: memref<1xf32, #tpu.memory_space<smem>>, %arg8: memref<1x128xf32, #tpu.memory_space<vmem>>) attributes {dimension_semantics = [#tpu.dimension_semantics<parallel>], iteration_bounds = array<i64: 1>, scalar_prefetch = 0 : i64, scratch_operands = 0 : i64, tpu.core_type = #tpu.core_type<tc>, window_params = [{transform_indices = @transform_0, window_bounds = array<i64: 8, 1, 128>}, {transform_indices = @transform_1, window_bounds = array<i64: 6, 8>}, {transform_indices = @transform_2, window_bounds = array<i64: 6>}, {transform_indices = @transform_3, window_bounds = array<i64: 4, 6>}, {transform_indices = @transform_4, window_bounds = array<i64: 4>}, {transform_indices = @transform_5, window_bounds = array<i64: 1, 4>}, {transform_indices = @transform_6, window_bounds = array<i64: 1>}, {transform_indices = @transform_7, window_bounds = array<i64: 1, 128>}]} {
    %c0 = arith.constant 0 : index
    %c0_0 = arith.constant 0 : index
    %c0_1 = arith.constant 0 : index
    %0 = vector.load %arg1[%c0, %c0_0, %c0_1] : memref<8x1x128xf32, #tpu.memory_space<vmem>>, vector<1x1x128xf32>
    %1 = vector.shape_cast %0 : vector<1x1x128xf32> to vector<1x128xf32>
    %c1 = arith.constant 1 : index
    %c0_2 = arith.constant 0 : index
    %c0_3 = arith.constant 0 : index
    %2 = vector.load %arg1[%c1, %c0_2, %c0_3] : memref<8x1x128xf32, #tpu.memory_space<vmem>>, vector<1x1x128xf32>
    %3 = vector.shape_cast %2 : vector<1x1x128xf32> to vector<1x128xf32>
    %c2 = arith.constant 2 : index
    %c0_4 = arith.constant 0 : index
    %c0_5 = arith.constant 0 : index
    %4 = vector.load %arg1[%c2, %c0_4, %c0_5] : memref<8x1x128xf32, #tpu.memory_space<vmem>>, vector<1x1x128xf32>
    %5 = vector.shape_cast %4 : vector<1x1x128xf32> to vector<1x128xf32>
    %c3 = arith.constant 3 : index
    %c0_6 = arith.constant 0 : index
    %c0_7 = arith.constant 0 : index
    %6 = vector.load %arg1[%c3, %c0_6, %c0_7] : memref<8x1x128xf32, #tpu.memory_space<vmem>>, vector<1x1x128xf32>
    %7 = vector.shape_cast %6 : vector<1x1x128xf32> to vector<1x128xf32>
    %c4 = arith.constant 4 : index
    %c0_8 = arith.constant 0 : index
    %c0_9 = arith.constant 0 : index
    %8 = vector.load %arg1[%c4, %c0_8, %c0_9] : memref<8x1x128xf32, #tpu.memory_space<vmem>>, vector<1x1x128xf32>
    %9 = vector.shape_cast %8 : vector<1x1x128xf32> to vector<1x128xf32>
    %c5 = arith.constant 5 : index
    %c0_10 = arith.constant 0 : index
    %c0_11 = arith.constant 0 : index
    %10 = vector.load %arg1[%c5, %c0_10, %c0_11] : memref<8x1x128xf32, #tpu.memory_space<vmem>>, vector<1x1x128xf32>
    %11 = vector.shape_cast %10 : vector<1x1x128xf32> to vector<1x128xf32>
    %c6 = arith.constant 6 : index
    %c0_12 = arith.constant 0 : index
    %c0_13 = arith.constant 0 : index
    %12 = vector.load %arg1[%c6, %c0_12, %c0_13] : memref<8x1x128xf32, #tpu.memory_space<vmem>>, vector<1x1x128xf32>
    %13 = vector.shape_cast %12 : vector<1x1x128xf32> to vector<1x128xf32>
    %c7 = arith.constant 7 : index
    %c0_14 = arith.constant 0 : index
    %c0_15 = arith.constant 0 : index
    %14 = vector.load %arg1[%c7, %c0_14, %c0_15] : memref<8x1x128xf32, #tpu.memory_space<vmem>>, vector<1x1x128xf32>
    %15 = vector.shape_cast %14 : vector<1x1x128xf32> to vector<1x128xf32>
    %c0_16 = arith.constant 0 : index
    %c0_17 = arith.constant 0 : index
    %16 = memref.load %arg2[%c0_16, %c0_17] : memref<6x8xf32, #tpu.memory_space<smem>>
    %17 = vector.broadcast %16 : f32 to vector<1x128xf32>
    %18 = arith.mulf %1, %17 : vector<1x128xf32>
    %c0_18 = arith.constant 0 : index
    %c1_19 = arith.constant 1 : index
    %19 = memref.load %arg2[%c0_18, %c1_19] : memref<6x8xf32, #tpu.memory_space<smem>>
    %20 = vector.broadcast %19 : f32 to vector<1x128xf32>
    %21 = arith.mulf %3, %20 : vector<1x128xf32>
    %22 = arith.addf %18, %21 : vector<1x128xf32>
    %c0_20 = arith.constant 0 : index
    %c2_21 = arith.constant 2 : index
    %23 = memref.load %arg2[%c0_20, %c2_21] : memref<6x8xf32, #tpu.memory_space<smem>>
    %24 = vector.broadcast %23 : f32 to vector<1x128xf32>
    %25 = arith.mulf %5, %24 : vector<1x128xf32>
    %26 = arith.addf %22, %25 : vector<1x128xf32>
    %c0_22 = arith.constant 0 : index
    %c3_23 = arith.constant 3 : index
    %27 = memref.load %arg2[%c0_22, %c3_23] : memref<6x8xf32, #tpu.memory_space<smem>>
    %28 = vector.broadcast %27 : f32 to vector<1x128xf32>
    %29 = arith.mulf %7, %28 : vector<1x128xf32>
    %30 = arith.addf %26, %29 : vector<1x128xf32>
    %c0_24 = arith.constant 0 : index
    %c4_25 = arith.constant 4 : index
    %31 = memref.load %arg2[%c0_24, %c4_25] : memref<6x8xf32, #tpu.memory_space<smem>>
    %32 = vector.broadcast %31 : f32 to vector<1x128xf32>
    %33 = arith.mulf %9, %32 : vector<1x128xf32>
    %34 = arith.addf %30, %33 : vector<1x128xf32>
    %c0_26 = arith.constant 0 : index
    %c5_27 = arith.constant 5 : index
    %35 = memref.load %arg2[%c0_26, %c5_27] : memref<6x8xf32, #tpu.memory_space<smem>>
    %36 = vector.broadcast %35 : f32 to vector<1x128xf32>
    %37 = arith.mulf %11, %36 : vector<1x128xf32>
    %38 = arith.addf %34, %37 : vector<1x128xf32>
    %c0_28 = arith.constant 0 : index
    %c6_29 = arith.constant 6 : index
    %39 = memref.load %arg2[%c0_28, %c6_29] : memref<6x8xf32, #tpu.memory_space<smem>>
    %40 = vector.broadcast %39 : f32 to vector<1x128xf32>
    %41 = arith.mulf %13, %40 : vector<1x128xf32>
    %42 = arith.addf %38, %41 : vector<1x128xf32>
    %c0_30 = arith.constant 0 : index
    %c7_31 = arith.constant 7 : index
    %43 = memref.load %arg2[%c0_30, %c7_31] : memref<6x8xf32, #tpu.memory_space<smem>>
    %44 = vector.broadcast %43 : f32 to vector<1x128xf32>
    %45 = arith.mulf %15, %44 : vector<1x128xf32>
    %46 = arith.addf %42, %45 : vector<1x128xf32>
    %c0_32 = arith.constant 0 : index
    %47 = memref.load %arg3[%c0_32] : memref<6xf32, #tpu.memory_space<smem>>
    %48 = vector.broadcast %47 : f32 to vector<1x128xf32>
    %49 = arith.addf %46, %48 : vector<1x128xf32>
    %50 = math.tanh %49 : vector<1x128xf32>
    %c1_33 = arith.constant 1 : index
    %c0_34 = arith.constant 0 : index
    %51 = memref.load %arg2[%c1_33, %c0_34] : memref<6x8xf32, #tpu.memory_space<smem>>
    %52 = vector.broadcast %51 : f32 to vector<1x128xf32>
    %53 = arith.mulf %1, %52 : vector<1x128xf32>
    %c1_35 = arith.constant 1 : index
    %c1_36 = arith.constant 1 : index
    %54 = memref.load %arg2[%c1_35, %c1_36] : memref<6x8xf32, #tpu.memory_space<smem>>
    %55 = vector.broadcast %54 : f32 to vector<1x128xf32>
    %56 = arith.mulf %3, %55 : vector<1x128xf32>
    %57 = arith.addf %53, %56 : vector<1x128xf32>
    %c1_37 = arith.constant 1 : index
    %c2_38 = arith.constant 2 : index
    %58 = memref.load %arg2[%c1_37, %c2_38] : memref<6x8xf32, #tpu.memory_space<smem>>
    %59 = vector.broadcast %58 : f32 to vector<1x128xf32>
    %60 = arith.mulf %5, %59 : vector<1x128xf32>
    %61 = arith.addf %57, %60 : vector<1x128xf32>
    %c1_39 = arith.constant 1 : index
    %c3_40 = arith.constant 3 : index
    %62 = memref.load %arg2[%c1_39, %c3_40] : memref<6x8xf32, #tpu.memory_space<smem>>
    %63 = vector.broadcast %62 : f32 to vector<1x128xf32>
    %64 = arith.mulf %7, %63 : vector<1x128xf32>
    %65 = arith.addf %61, %64 : vector<1x128xf32>
    %c1_41 = arith.constant 1 : index
    %c4_42 = arith.constant 4 : index
    %66 = memref.load %arg2[%c1_41, %c4_42] : memref<6x8xf32, #tpu.memory_space<smem>>
    %67 = vector.broadcast %66 : f32 to vector<1x128xf32>
    %68 = arith.mulf %9, %67 : vector<1x128xf32>
    %69 = arith.addf %65, %68 : vector<1x128xf32>
    %c1_43 = arith.constant 1 : index
    %c5_44 = arith.constant 5 : index
    %70 = memref.load %arg2[%c1_43, %c5_44] : memref<6x8xf32, #tpu.memory_space<smem>>
    %71 = vector.broadcast %70 : f32 to vector<1x128xf32>
    %72 = arith.mulf %11, %71 : vector<1x128xf32>
    %73 = arith.addf %69, %72 : vector<1x128xf32>
    %c1_45 = arith.constant 1 : index
    %c6_46 = arith.constant 6 : index
    %74 = memref.load %arg2[%c1_45, %c6_46] : memref<6x8xf32, #tpu.memory_space<smem>>
    %75 = vector.broadcast %74 : f32 to vector<1x128xf32>
    %76 = arith.mulf %13, %75 : vector<1x128xf32>
    %77 = arith.addf %73, %76 : vector<1x128xf32>
    %c1_47 = arith.constant 1 : index
    %c7_48 = arith.constant 7 : index
    %78 = memref.load %arg2[%c1_47, %c7_48] : memref<6x8xf32, #tpu.memory_space<smem>>
    %79 = vector.broadcast %78 : f32 to vector<1x128xf32>
    %80 = arith.mulf %15, %79 : vector<1x128xf32>
    %81 = arith.addf %77, %80 : vector<1x128xf32>
    %c1_49 = arith.constant 1 : index
    %82 = memref.load %arg3[%c1_49] : memref<6xf32, #tpu.memory_space<smem>>
    %83 = vector.broadcast %82 : f32 to vector<1x128xf32>
    %84 = arith.addf %81, %83 : vector<1x128xf32>
    %85 = math.tanh %84 : vector<1x128xf32>
    %c2_50 = arith.constant 2 : index
    %c0_51 = arith.constant 0 : index
    %86 = memref.load %arg2[%c2_50, %c0_51] : memref<6x8xf32, #tpu.memory_space<smem>>
    %87 = vector.broadcast %86 : f32 to vector<1x128xf32>
    %88 = arith.mulf %1, %87 : vector<1x128xf32>
    %c2_52 = arith.constant 2 : index
    %c1_53 = arith.constant 1 : index
    %89 = memref.load %arg2[%c2_52, %c1_53] : memref<6x8xf32, #tpu.memory_space<smem>>
    %90 = vector.broadcast %89 : f32 to vector<1x128xf32>
    %91 = arith.mulf %3, %90 : vector<1x128xf32>
    %92 = arith.addf %88, %91 : vector<1x128xf32>
    %c2_54 = arith.constant 2 : index
    %c2_55 = arith.constant 2 : index
    %93 = memref.load %arg2[%c2_54, %c2_55] : memref<6x8xf32, #tpu.memory_space<smem>>
    %94 = vector.broadcast %93 : f32 to vector<1x128xf32>
    %95 = arith.mulf %5, %94 : vector<1x128xf32>
    %96 = arith.addf %92, %95 : vector<1x128xf32>
    %c2_56 = arith.constant 2 : index
    %c3_57 = arith.constant 3 : index
    %97 = memref.load %arg2[%c2_56, %c3_57] : memref<6x8xf32, #tpu.memory_space<smem>>
    %98 = vector.broadcast %97 : f32 to vector<1x128xf32>
    %99 = arith.mulf %7, %98 : vector<1x128xf32>
    %100 = arith.addf %96, %99 : vector<1x128xf32>
    %c2_58 = arith.constant 2 : index
    %c4_59 = arith.constant 4 : index
    %101 = memref.load %arg2[%c2_58, %c4_59] : memref<6x8xf32, #tpu.memory_space<smem>>
    %102 = vector.broadcast %101 : f32 to vector<1x128xf32>
    %103 = arith.mulf %9, %102 : vector<1x128xf32>
    %104 = arith.addf %100, %103 : vector<1x128xf32>
    %c2_60 = arith.constant 2 : index
    %c5_61 = arith.constant 5 : index
    %105 = memref.load %arg2[%c2_60, %c5_61] : memref<6x8xf32, #tpu.memory_space<smem>>
    %106 = vector.broadcast %105 : f32 to vector<1x128xf32>
    %107 = arith.mulf %11, %106 : vector<1x128xf32>
    %108 = arith.addf %104, %107 : vector<1x128xf32>
    %c2_62 = arith.constant 2 : index
    %c6_63 = arith.constant 6 : index
    %109 = memref.load %arg2[%c2_62, %c6_63] : memref<6x8xf32, #tpu.memory_space<smem>>
    %110 = vector.broadcast %109 : f32 to vector<1x128xf32>
    %111 = arith.mulf %13, %110 : vector<1x128xf32>
    %112 = arith.addf %108, %111 : vector<1x128xf32>
    %c2_64 = arith.constant 2 : index
    %c7_65 = arith.constant 7 : index
    %113 = memref.load %arg2[%c2_64, %c7_65] : memref<6x8xf32, #tpu.memory_space<smem>>
    %114 = vector.broadcast %113 : f32 to vector<1x128xf32>
    %115 = arith.mulf %15, %114 : vector<1x128xf32>
    %116 = arith.addf %112, %115 : vector<1x128xf32>
    %c2_66 = arith.constant 2 : index
    %117 = memref.load %arg3[%c2_66] : memref<6xf32, #tpu.memory_space<smem>>
    %118 = vector.broadcast %117 : f32 to vector<1x128xf32>
    %119 = arith.addf %116, %118 : vector<1x128xf32>
    %120 = math.tanh %119 : vector<1x128xf32>
    %c3_67 = arith.constant 3 : index
    %c0_68 = arith.constant 0 : index
    %121 = memref.load %arg2[%c3_67, %c0_68] : memref<6x8xf32, #tpu.memory_space<smem>>
    %122 = vector.broadcast %121 : f32 to vector<1x128xf32>
    %123 = arith.mulf %1, %122 : vector<1x128xf32>
    %c3_69 = arith.constant 3 : index
    %c1_70 = arith.constant 1 : index
    %124 = memref.load %arg2[%c3_69, %c1_70] : memref<6x8xf32, #tpu.memory_space<smem>>
    %125 = vector.broadcast %124 : f32 to vector<1x128xf32>
    %126 = arith.mulf %3, %125 : vector<1x128xf32>
    %127 = arith.addf %123, %126 : vector<1x128xf32>
    %c3_71 = arith.constant 3 : index
    %c2_72 = arith.constant 2 : index
    %128 = memref.load %arg2[%c3_71, %c2_72] : memref<6x8xf32, #tpu.memory_space<smem>>
    %129 = vector.broadcast %128 : f32 to vector<1x128xf32>
    %130 = arith.mulf %5, %129 : vector<1x128xf32>
    %131 = arith.addf %127, %130 : vector<1x128xf32>
    %c3_73 = arith.constant 3 : index
    %c3_74 = arith.constant 3 : index
    %132 = memref.load %arg2[%c3_73, %c3_74] : memref<6x8xf32, #tpu.memory_space<smem>>
    %133 = vector.broadcast %132 : f32 to vector<1x128xf32>
    %134 = arith.mulf %7, %133 : vector<1x128xf32>
    %135 = arith.addf %131, %134 : vector<1x128xf32>
    %c3_75 = arith.constant 3 : index
    %c4_76 = arith.constant 4 : index
    %136 = memref.load %arg2[%c3_75, %c4_76] : memref<6x8xf32, #tpu.memory_space<smem>>
    %137 = vector.broadcast %136 : f32 to vector<1x128xf32>
    %138 = arith.mulf %9, %137 : vector<1x128xf32>
    %139 = arith.addf %135, %138 : vector<1x128xf32>
    %c3_77 = arith.constant 3 : index
    %c5_78 = arith.constant 5 : index
    %140 = memref.load %arg2[%c3_77, %c5_78] : memref<6x8xf32, #tpu.memory_space<smem>>
    %141 = vector.broadcast %140 : f32 to vector<1x128xf32>
    %142 = arith.mulf %11, %141 : vector<1x128xf32>
    %143 = arith.addf %139, %142 : vector<1x128xf32>
    %c3_79 = arith.constant 3 : index
    %c6_80 = arith.constant 6 : index
    %144 = memref.load %arg2[%c3_79, %c6_80] : memref<6x8xf32, #tpu.memory_space<smem>>
    %145 = vector.broadcast %144 : f32 to vector<1x128xf32>
    %146 = arith.mulf %13, %145 : vector<1x128xf32>
    %147 = arith.addf %143, %146 : vector<1x128xf32>
    %c3_81 = arith.constant 3 : index
    %c7_82 = arith.constant 7 : index
    %148 = memref.load %arg2[%c3_81, %c7_82] : memref<6x8xf32, #tpu.memory_space<smem>>
    %149 = vector.broadcast %148 : f32 to vector<1x128xf32>
    %150 = arith.mulf %15, %149 : vector<1x128xf32>
    %151 = arith.addf %147, %150 : vector<1x128xf32>
    %c3_83 = arith.constant 3 : index
    %152 = memref.load %arg3[%c3_83] : memref<6xf32, #tpu.memory_space<smem>>
    %153 = vector.broadcast %152 : f32 to vector<1x128xf32>
    %154 = arith.addf %151, %153 : vector<1x128xf32>
    %155 = math.tanh %154 : vector<1x128xf32>
    %c4_84 = arith.constant 4 : index
    %c0_85 = arith.constant 0 : index
    %156 = memref.load %arg2[%c4_84, %c0_85] : memref<6x8xf32, #tpu.memory_space<smem>>
    %157 = vector.broadcast %156 : f32 to vector<1x128xf32>
    %158 = arith.mulf %1, %157 : vector<1x128xf32>
    %c4_86 = arith.constant 4 : index
    %c1_87 = arith.constant 1 : index
    %159 = memref.load %arg2[%c4_86, %c1_87] : memref<6x8xf32, #tpu.memory_space<smem>>
    %160 = vector.broadcast %159 : f32 to vector<1x128xf32>
    %161 = arith.mulf %3, %160 : vector<1x128xf32>
    %162 = arith.addf %158, %161 : vector<1x128xf32>
    %c4_88 = arith.constant 4 : index
    %c2_89 = arith.constant 2 : index
    %163 = memref.load %arg2[%c4_88, %c2_89] : memref<6x8xf32, #tpu.memory_space<smem>>
    %164 = vector.broadcast %163 : f32 to vector<1x128xf32>
    %165 = arith.mulf %5, %164 : vector<1x128xf32>
    %166 = arith.addf %162, %165 : vector<1x128xf32>
    %c4_90 = arith.constant 4 : index
    %c3_91 = arith.constant 3 : index
    %167 = memref.load %arg2[%c4_90, %c3_91] : memref<6x8xf32, #tpu.memory_space<smem>>
    %168 = vector.broadcast %167 : f32 to vector<1x128xf32>
    %169 = arith.mulf %7, %168 : vector<1x128xf32>
    %170 = arith.addf %166, %169 : vector<1x128xf32>
    %c4_92 = arith.constant 4 : index
    %c4_93 = arith.constant 4 : index
    %171 = memref.load %arg2[%c4_92, %c4_93] : memref<6x8xf32, #tpu.memory_space<smem>>
    %172 = vector.broadcast %171 : f32 to vector<1x128xf32>
    %173 = arith.mulf %9, %172 : vector<1x128xf32>
    %174 = arith.addf %170, %173 : vector<1x128xf32>
    %c4_94 = arith.constant 4 : index
    %c5_95 = arith.constant 5 : index
    %175 = memref.load %arg2[%c4_94, %c5_95] : memref<6x8xf32, #tpu.memory_space<smem>>
    %176 = vector.broadcast %175 : f32 to vector<1x128xf32>
    %177 = arith.mulf %11, %176 : vector<1x128xf32>
    %178 = arith.addf %174, %177 : vector<1x128xf32>
    %c4_96 = arith.constant 4 : index
    %c6_97 = arith.constant 6 : index
    %179 = memref.load %arg2[%c4_96, %c6_97] : memref<6x8xf32, #tpu.memory_space<smem>>
    %180 = vector.broadcast %179 : f32 to vector<1x128xf32>
    %181 = arith.mulf %13, %180 : vector<1x128xf32>
    %182 = arith.addf %178, %181 : vector<1x128xf32>
    %c4_98 = arith.constant 4 : index
    %c7_99 = arith.constant 7 : index
    %183 = memref.load %arg2[%c4_98, %c7_99] : memref<6x8xf32, #tpu.memory_space<smem>>
    %184 = vector.broadcast %183 : f32 to vector<1x128xf32>
    %185 = arith.mulf %15, %184 : vector<1x128xf32>
    %186 = arith.addf %182, %185 : vector<1x128xf32>
    %c4_100 = arith.constant 4 : index
    %187 = memref.load %arg3[%c4_100] : memref<6xf32, #tpu.memory_space<smem>>
    %188 = vector.broadcast %187 : f32 to vector<1x128xf32>
    %189 = arith.addf %186, %188 : vector<1x128xf32>
    %190 = math.tanh %189 : vector<1x128xf32>
    %c5_101 = arith.constant 5 : index
    %c0_102 = arith.constant 0 : index
    %191 = memref.load %arg2[%c5_101, %c0_102] : memref<6x8xf32, #tpu.memory_space<smem>>
    %192 = vector.broadcast %191 : f32 to vector<1x128xf32>
    %193 = arith.mulf %1, %192 : vector<1x128xf32>
    %c5_103 = arith.constant 5 : index
    %c1_104 = arith.constant 1 : index
    %194 = memref.load %arg2[%c5_103, %c1_104] : memref<6x8xf32, #tpu.memory_space<smem>>
    %195 = vector.broadcast %194 : f32 to vector<1x128xf32>
    %196 = arith.mulf %3, %195 : vector<1x128xf32>
    %197 = arith.addf %193, %196 : vector<1x128xf32>
    %c5_105 = arith.constant 5 : index
    %c2_106 = arith.constant 2 : index
    %198 = memref.load %arg2[%c5_105, %c2_106] : memref<6x8xf32, #tpu.memory_space<smem>>
    %199 = vector.broadcast %198 : f32 to vector<1x128xf32>
    %200 = arith.mulf %5, %199 : vector<1x128xf32>
    %201 = arith.addf %197, %200 : vector<1x128xf32>
    %c5_107 = arith.constant 5 : index
    %c3_108 = arith.constant 3 : index
    %202 = memref.load %arg2[%c5_107, %c3_108] : memref<6x8xf32, #tpu.memory_space<smem>>
    %203 = vector.broadcast %202 : f32 to vector<1x128xf32>
    %204 = arith.mulf %7, %203 : vector<1x128xf32>
    %205 = arith.addf %201, %204 : vector<1x128xf32>
    %c5_109 = arith.constant 5 : index
    %c4_110 = arith.constant 4 : index
    %206 = memref.load %arg2[%c5_109, %c4_110] : memref<6x8xf32, #tpu.memory_space<smem>>
    %207 = vector.broadcast %206 : f32 to vector<1x128xf32>
    %208 = arith.mulf %9, %207 : vector<1x128xf32>
    %209 = arith.addf %205, %208 : vector<1x128xf32>
    %c5_111 = arith.constant 5 : index
    %c5_112 = arith.constant 5 : index
    %210 = memref.load %arg2[%c5_111, %c5_112] : memref<6x8xf32, #tpu.memory_space<smem>>
    %211 = vector.broadcast %210 : f32 to vector<1x128xf32>
    %212 = arith.mulf %11, %211 : vector<1x128xf32>
    %213 = arith.addf %209, %212 : vector<1x128xf32>
    %c5_113 = arith.constant 5 : index
    %c6_114 = arith.constant 6 : index
    %214 = memref.load %arg2[%c5_113, %c6_114] : memref<6x8xf32, #tpu.memory_space<smem>>
    %215 = vector.broadcast %214 : f32 to vector<1x128xf32>
    %216 = arith.mulf %13, %215 : vector<1x128xf32>
    %217 = arith.addf %213, %216 : vector<1x128xf32>
    %c5_115 = arith.constant 5 : index
    %c7_116 = arith.constant 7 : index
    %218 = memref.load %arg2[%c5_115, %c7_116] : memref<6x8xf32, #tpu.memory_space<smem>>
    %219 = vector.broadcast %218 : f32 to vector<1x128xf32>
    %220 = arith.mulf %15, %219 : vector<1x128xf32>
    %221 = arith.addf %217, %220 : vector<1x128xf32>
    %c5_117 = arith.constant 5 : index
    %222 = memref.load %arg3[%c5_117] : memref<6xf32, #tpu.memory_space<smem>>
    %223 = vector.broadcast %222 : f32 to vector<1x128xf32>
    %224 = arith.addf %221, %223 : vector<1x128xf32>
    %225 = math.tanh %224 : vector<1x128xf32>
    %c0_118 = arith.constant 0 : index
    %c0_119 = arith.constant 0 : index
    %226 = memref.load %arg4[%c0_118, %c0_119] : memref<4x6xf32, #tpu.memory_space<smem>>
    %227 = vector.broadcast %226 : f32 to vector<1x128xf32>
    %228 = arith.mulf %50, %227 : vector<1x128xf32>
    %c0_120 = arith.constant 0 : index
    %c1_121 = arith.constant 1 : index
    %229 = memref.load %arg4[%c0_120, %c1_121] : memref<4x6xf32, #tpu.memory_space<smem>>
    %230 = vector.broadcast %229 : f32 to vector<1x128xf32>
    %231 = arith.mulf %85, %230 : vector<1x128xf32>
    %232 = arith.addf %228, %231 : vector<1x128xf32>
    %c0_122 = arith.constant 0 : index
    %c2_123 = arith.constant 2 : index
    %233 = memref.load %arg4[%c0_122, %c2_123] : memref<4x6xf32, #tpu.memory_space<smem>>
    %234 = vector.broadcast %233 : f32 to vector<1x128xf32>
    %235 = arith.mulf %120, %234 : vector<1x128xf32>
    %236 = arith.addf %232, %235 : vector<1x128xf32>
    %c0_124 = arith.constant 0 : index
    %c3_125 = arith.constant 3 : index
    %237 = memref.load %arg4[%c0_124, %c3_125] : memref<4x6xf32, #tpu.memory_space<smem>>
    %238 = vector.broadcast %237 : f32 to vector<1x128xf32>
    %239 = arith.mulf %155, %238 : vector<1x128xf32>
    %240 = arith.addf %236, %239 : vector<1x128xf32>
    %c0_126 = arith.constant 0 : index
    %c4_127 = arith.constant 4 : index
    %241 = memref.load %arg4[%c0_126, %c4_127] : memref<4x6xf32, #tpu.memory_space<smem>>
    %242 = vector.broadcast %241 : f32 to vector<1x128xf32>
    %243 = arith.mulf %190, %242 : vector<1x128xf32>
    %244 = arith.addf %240, %243 : vector<1x128xf32>
    %c0_128 = arith.constant 0 : index
    %c5_129 = arith.constant 5 : index
    %245 = memref.load %arg4[%c0_128, %c5_129] : memref<4x6xf32, #tpu.memory_space<smem>>
    %246 = vector.broadcast %245 : f32 to vector<1x128xf32>
    %247 = arith.mulf %225, %246 : vector<1x128xf32>
    %248 = arith.addf %244, %247 : vector<1x128xf32>
    %c0_130 = arith.constant 0 : index
    %249 = memref.load %arg5[%c0_130] : memref<4xf32, #tpu.memory_space<smem>>
    %250 = vector.broadcast %249 : f32 to vector<1x128xf32>
    %251 = arith.addf %248, %250 : vector<1x128xf32>
    %252 = math.tanh %251 : vector<1x128xf32>
    %c1_131 = arith.constant 1 : index
    %c0_132 = arith.constant 0 : index
    %253 = memref.load %arg4[%c1_131, %c0_132] : memref<4x6xf32, #tpu.memory_space<smem>>
    %254 = vector.broadcast %253 : f32 to vector<1x128xf32>
    %255 = arith.mulf %50, %254 : vector<1x128xf32>
    %c1_133 = arith.constant 1 : index
    %c1_134 = arith.constant 1 : index
    %256 = memref.load %arg4[%c1_133, %c1_134] : memref<4x6xf32, #tpu.memory_space<smem>>
    %257 = vector.broadcast %256 : f32 to vector<1x128xf32>
    %258 = arith.mulf %85, %257 : vector<1x128xf32>
    %259 = arith.addf %255, %258 : vector<1x128xf32>
    %c1_135 = arith.constant 1 : index
    %c2_136 = arith.constant 2 : index
    %260 = memref.load %arg4[%c1_135, %c2_136] : memref<4x6xf32, #tpu.memory_space<smem>>
    %261 = vector.broadcast %260 : f32 to vector<1x128xf32>
    %262 = arith.mulf %120, %261 : vector<1x128xf32>
    %263 = arith.addf %259, %262 : vector<1x128xf32>
    %c1_137 = arith.constant 1 : index
    %c3_138 = arith.constant 3 : index
    %264 = memref.load %arg4[%c1_137, %c3_138] : memref<4x6xf32, #tpu.memory_space<smem>>
    %265 = vector.broadcast %264 : f32 to vector<1x128xf32>
    %266 = arith.mulf %155, %265 : vector<1x128xf32>
    %267 = arith.addf %263, %266 : vector<1x128xf32>
    %c1_139 = arith.constant 1 : index
    %c4_140 = arith.constant 4 : index
    %268 = memref.load %arg4[%c1_139, %c4_140] : memref<4x6xf32, #tpu.memory_space<smem>>
    %269 = vector.broadcast %268 : f32 to vector<1x128xf32>
    %270 = arith.mulf %190, %269 : vector<1x128xf32>
    %271 = arith.addf %267, %270 : vector<1x128xf32>
    %c1_141 = arith.constant 1 : index
    %c5_142 = arith.constant 5 : index
    %272 = memref.load %arg4[%c1_141, %c5_142] : memref<4x6xf32, #tpu.memory_space<smem>>
    %273 = vector.broadcast %272 : f32 to vector<1x128xf32>
    %274 = arith.mulf %225, %273 : vector<1x128xf32>
    %275 = arith.addf %271, %274 : vector<1x128xf32>
    %c1_143 = arith.constant 1 : index
    %276 = memref.load %arg5[%c1_143] : memref<4xf32, #tpu.memory_space<smem>>
    %277 = vector.broadcast %276 : f32 to vector<1x128xf32>
    %278 = arith.addf %275, %277 : vector<1x128xf32>
    %279 = math.tanh %278 : vector<1x128xf32>
    %c2_144 = arith.constant 2 : index
    %c0_145 = arith.constant 0 : index
    %280 = memref.load %arg4[%c2_144, %c0_145] : memref<4x6xf32, #tpu.memory_space<smem>>
    %281 = vector.broadcast %280 : f32 to vector<1x128xf32>
    %282 = arith.mulf %50, %281 : vector<1x128xf32>
    %c2_146 = arith.constant 2 : index
    %c1_147 = arith.constant 1 : index
    %283 = memref.load %arg4[%c2_146, %c1_147] : memref<4x6xf32, #tpu.memory_space<smem>>
    %284 = vector.broadcast %283 : f32 to vector<1x128xf32>
    %285 = arith.mulf %85, %284 : vector<1x128xf32>
    %286 = arith.addf %282, %285 : vector<1x128xf32>
    %c2_148 = arith.constant 2 : index
    %c2_149 = arith.constant 2 : index
    %287 = memref.load %arg4[%c2_148, %c2_149] : memref<4x6xf32, #tpu.memory_space<smem>>
    %288 = vector.broadcast %287 : f32 to vector<1x128xf32>
    %289 = arith.mulf %120, %288 : vector<1x128xf32>
    %290 = arith.addf %286, %289 : vector<1x128xf32>
    %c2_150 = arith.constant 2 : index
    %c3_151 = arith.constant 3 : index
    %291 = memref.load %arg4[%c2_150, %c3_151] : memref<4x6xf32, #tpu.memory_space<smem>>
    %292 = vector.broadcast %291 : f32 to vector<1x128xf32>
    %293 = arith.mulf %155, %292 : vector<1x128xf32>
    %294 = arith.addf %290, %293 : vector<1x128xf32>
    %c2_152 = arith.constant 2 : index
    %c4_153 = arith.constant 4 : index
    %295 = memref.load %arg4[%c2_152, %c4_153] : memref<4x6xf32, #tpu.memory_space<smem>>
    %296 = vector.broadcast %295 : f32 to vector<1x128xf32>
    %297 = arith.mulf %190, %296 : vector<1x128xf32>
    %298 = arith.addf %294, %297 : vector<1x128xf32>
    %c2_154 = arith.constant 2 : index
    %c5_155 = arith.constant 5 : index
    %299 = memref.load %arg4[%c2_154, %c5_155] : memref<4x6xf32, #tpu.memory_space<smem>>
    %300 = vector.broadcast %299 : f32 to vector<1x128xf32>
    %301 = arith.mulf %225, %300 : vector<1x128xf32>
    %302 = arith.addf %298, %301 : vector<1x128xf32>
    %c2_156 = arith.constant 2 : index
    %303 = memref.load %arg5[%c2_156] : memref<4xf32, #tpu.memory_space<smem>>
    %304 = vector.broadcast %303 : f32 to vector<1x128xf32>
    %305 = arith.addf %302, %304 : vector<1x128xf32>
    %306 = math.tanh %305 : vector<1x128xf32>
    %c3_157 = arith.constant 3 : index
    %c0_158 = arith.constant 0 : index
    %307 = memref.load %arg4[%c3_157, %c0_158] : memref<4x6xf32, #tpu.memory_space<smem>>
    %308 = vector.broadcast %307 : f32 to vector<1x128xf32>
    %309 = arith.mulf %50, %308 : vector<1x128xf32>
    %c3_159 = arith.constant 3 : index
    %c1_160 = arith.constant 1 : index
    %310 = memref.load %arg4[%c3_159, %c1_160] : memref<4x6xf32, #tpu.memory_space<smem>>
    %311 = vector.broadcast %310 : f32 to vector<1x128xf32>
    %312 = arith.mulf %85, %311 : vector<1x128xf32>
    %313 = arith.addf %309, %312 : vector<1x128xf32>
    %c3_161 = arith.constant 3 : index
    %c2_162 = arith.constant 2 : index
    %314 = memref.load %arg4[%c3_161, %c2_162] : memref<4x6xf32, #tpu.memory_space<smem>>
    %315 = vector.broadcast %314 : f32 to vector<1x128xf32>
    %316 = arith.mulf %120, %315 : vector<1x128xf32>
    %317 = arith.addf %313, %316 : vector<1x128xf32>
    %c3_163 = arith.constant 3 : index
    %c3_164 = arith.constant 3 : index
    %318 = memref.load %arg4[%c3_163, %c3_164] : memref<4x6xf32, #tpu.memory_space<smem>>
    %319 = vector.broadcast %318 : f32 to vector<1x128xf32>
    %320 = arith.mulf %155, %319 : vector<1x128xf32>
    %321 = arith.addf %317, %320 : vector<1x128xf32>
    %c3_165 = arith.constant 3 : index
    %c4_166 = arith.constant 4 : index
    %322 = memref.load %arg4[%c3_165, %c4_166] : memref<4x6xf32, #tpu.memory_space<smem>>
    %323 = vector.broadcast %322 : f32 to vector<1x128xf32>
    %324 = arith.mulf %190, %323 : vector<1x128xf32>
    %325 = arith.addf %321, %324 : vector<1x128xf32>
    %c3_167 = arith.constant 3 : index
    %c5_168 = arith.constant 5 : index
    %326 = memref.load %arg4[%c3_167, %c5_168] : memref<4x6xf32, #tpu.memory_space<smem>>
    %327 = vector.broadcast %326 : f32 to vector<1x128xf32>
    %328 = arith.mulf %225, %327 : vector<1x128xf32>
    %329 = arith.addf %325, %328 : vector<1x128xf32>
    %c3_169 = arith.constant 3 : index
    %330 = memref.load %arg5[%c3_169] : memref<4xf32, #tpu.memory_space<smem>>
    %331 = vector.broadcast %330 : f32 to vector<1x128xf32>
    %332 = arith.addf %329, %331 : vector<1x128xf32>
    %333 = math.tanh %332 : vector<1x128xf32>
    %c0_170 = arith.constant 0 : index
    %c0_171 = arith.constant 0 : index
    %334 = memref.load %arg6[%c0_170, %c0_171] : memref<1x4xf32, #tpu.memory_space<smem>>
    %335 = vector.broadcast %334 : f32 to vector<1x128xf32>
    %336 = arith.mulf %252, %335 : vector<1x128xf32>
    %c0_172 = arith.constant 0 : index
    %c1_173 = arith.constant 1 : index
    %337 = memref.load %arg6[%c0_172, %c1_173] : memref<1x4xf32, #tpu.memory_space<smem>>
    %338 = vector.broadcast %337 : f32 to vector<1x128xf32>
    %339 = arith.mulf %279, %338 : vector<1x128xf32>
    %340 = arith.addf %336, %339 : vector<1x128xf32>
    %c0_174 = arith.constant 0 : index
    %c2_175 = arith.constant 2 : index
    %341 = memref.load %arg6[%c0_174, %c2_175] : memref<1x4xf32, #tpu.memory_space<smem>>
    %342 = vector.broadcast %341 : f32 to vector<1x128xf32>
    %343 = arith.mulf %306, %342 : vector<1x128xf32>
    %344 = arith.addf %340, %343 : vector<1x128xf32>
    %c0_176 = arith.constant 0 : index
    %c3_177 = arith.constant 3 : index
    %345 = memref.load %arg6[%c0_176, %c3_177] : memref<1x4xf32, #tpu.memory_space<smem>>
    %346 = vector.broadcast %345 : f32 to vector<1x128xf32>
    %347 = arith.mulf %333, %346 : vector<1x128xf32>
    %348 = arith.addf %344, %347 : vector<1x128xf32>
    %c0_178 = arith.constant 0 : index
    %349 = memref.load %arg7[%c0_178] : memref<1xf32, #tpu.memory_space<smem>>
    %350 = vector.broadcast %349 : f32 to vector<1x128xf32>
    %351 = arith.addf %348, %350 : vector<1x128xf32>
    %352 = math.tanh %351 : vector<1x128xf32>
    %cst = arith.constant 5.000000e-01 : f32
    %353 = vector.broadcast %cst : f32 to vector<1x128xf32>
    %354 = arith.mulf %353, %352 : vector<1x128xf32>
    %cst_179 = arith.constant 5.000000e-01 : f32
    %355 = vector.broadcast %cst_179 : f32 to vector<1x128xf32>
    %356 = arith.addf %354, %355 : vector<1x128xf32>
    %c0_180 = arith.constant 0 : index
    %c0_181 = arith.constant 0 : index
    %357 = vector.load %arg8[%c0_180, %c0_181] : memref<1x128xf32, #tpu.memory_space<vmem>>, vector<1x128xf32>
    tpu.vector_store %arg8[%c0_180, %c0_181], %356 {strides = array<i32>} : memref<1x128xf32, #tpu.memory_space<vmem>>, vector<1x128xf32>,
    return
  }
  func.func @transform_0(%arg0: i32) -> (i32, i32, i32) {
    %c0_i32 = arith.constant 0 : i32
    %c0_i32_0 = arith.constant 0 : i32
    %c0_i32_1 = arith.constant 0 : i32
    return %c0_i32, %arg0, %c0_i32_0 : i32, i32, i32
  }
  func.func @transform_1(%arg0: i32) -> (i32, i32) {
    %c0_i32 = arith.constant 0 : i32
    %c0_i32_0 = arith.constant 0 : i32
    %c0_i32_1 = arith.constant 0 : i32
    return %c0_i32, %c0_i32_0 : i32, i32
  }
  func.func @transform_2(%arg0: i32) -> i32 {
    %c0_i32 = arith.constant 0 : i32
    %c0_i32_0 = arith.constant 0 : i32
    return %c0_i32 : i32
  }
  func.func @transform_3(%arg0: i32) -> (i32, i32) {
    %c0_i32 = arith.constant 0 : i32
    %c0_i32_0 = arith.constant 0 : i32
    %c0_i32_1 = arith.constant 0 : i32
    return %c0_i32, %c0_i32_0 : i32, i32
  }
  func.func @transform_4(%arg0: i32) -> i32 {
    %c0_i32 = arith.constant 0 : i32
    %c0_i32_0 = arith.constant 0 : i32
    return %c0_i32 : i32
  }
  func.func @transform_5(%arg0: i32) -> (i32, i32) {
    %c0_i32 = arith.constant 0 : i32
    %c0_i32_0 = arith.constant 0 : i32
    %c0_i32_1 = arith.constant 0 : i32
    return %c0_i32, %c0_i32_0 : i32, i32
  }
  func.func @transform_6(%arg0: i32) -> i32 {
    %c0_i32 = arith.constant 0 : i32
    %c0_i32_0 = arith.constant 0 : i32
    return %c0_i32 : i32
  }
  func.func @transform_7(%arg0: i32) -> (i32, i32) {
    %c0_i32 = arith.constant 0 : i32
    %c0_i32_0 = arith.constant 0 : i32
    return %arg0, %c0_i32 : i32, i32
  }
}

</mosaic_0001>

<llo_original>
// kernel: mlp_forward.1
$region0: #{mlp_forward.1}
  #allocation0 [shape = 'u32[]', space=smem, size = 0x4, offset = 0x4, fixed_abs, tag = 'smem constant byte address 0x4 - core index']
  #allocation1 [shape = 'u32[144,128]{1,0:T(1,128)}', space=vmem, size = 0x12000, scoped, tag = 'internal scratch']
  #allocation2 [shape = 'f32[1]{0:T(128)S(6)}', space=smem, size = 0x200, scoped, tag = 'scoped memory for mlp_forward.1']
  %s0 = inlined_call_operand.vmem [shape: f32[8,1,128], index: 0, kind: input, shape index: {}]
  %s1 = inlined_call_operand.vmem [shape: f32[6,8], index: 1, kind: input, shape index: {}]
  %s2 = inlined_call_operand.vmem [shape: f32[6], index: 2, kind: input, shape index: {}]
  %s3 = inlined_call_operand.vmem [shape: f32[4,6], index: 3, kind: input, shape index: {}]
  %s4 = inlined_call_operand.vmem [shape: f32[4], index: 4, kind: input, shape index: {}]
  %s5 = inlined_call_operand.vmem [shape: f32[1,4], index: 5, kind: input, shape index: {}]
  %s6 = inlined_call_operand.<no memory space> [shape: f32[1], index: 6, kind: input, shape index: {}]
  %s7 = inlined_call_operand.vmem [shape: f32[1,128], index: 7, kind: output, shape index: {}]
  %s8 = sld [smem:[#allocation0]]
  $region58: #{mlp_forward.1} parent=0
    _
  %s10 = ssub.s32 1, %s8
  %s11 = scalar_select 0, %s10, %s8
  %12 = sst [smem:[#allocation2]] %s6
  $region1: #{mlp_forward.1} parent=0
    #allocation3 [shape = 'u8[4096]{0}', space=smem, size = 0x1000, scoped, tag = 'input window, operand 1, single buffered']
    #allocation4 [shape = 's32[1]{0}', space=sflag, size = 0x4, scoped, tag = 'scoped memory for mlp_forward.1']
    #allocation5 [shape = 'u8[512]{0}', space=smem, size = 0x200, scoped, tag = 'input window, operand 2, single buffered']
    #allocation6 [shape = 's32[1]{0}', space=sflag, size = 0x4, scoped, tag = 'scoped memory for mlp_forward.1']
    #allocation7 [shape = 'u8[2048]{0}', space=smem, size = 0x800, scoped, tag = 'input window, operand 3, single buffered']
    #allocation8 [shape = 'u8[512]{0}', space=smem, size = 0x200, scoped, tag = 'input window, operand 4, single buffered']
    #allocation9 [shape = 's32[1]{0}', space=sflag, size = 0x4, scoped, tag = 'scoped memory for mlp_forward.1']
    #allocation10 [shape = 'u8[512]{0}', space=smem, size = 0x200, scoped, tag = 'input window, operand 5, single buffered']
    %13 = vsyncpa [#allocation4], 0
    %14 = vsyncpa [#allocation6], 0
    %15 = vsyncpa [#allocation9], 0
    // Predicated region
    $region2: #{mlp_forward.1} parent=1 // pred_check
      _
    $region3: #{mlp_forward.1} parent=1 // pred_check_branch
      %17 = sbr.rel (0) target = $region5
    $region4: #{mlp_forward.1} parent=1 // pred_region
      _
    $region5: #{mlp_forward.1} parent=1 // pred_fallthru
      _
    // Predicated region
    $region6: #{mlp_forward.1} parent=1 // pred_check
      _
    $region7: #{mlp_forward.1} parent=1 // pred_check_branch
      %19 = sbr.rel (0) target = $region9
    $region8: #{mlp_forward.1} parent=1 // pred_region
      %s21 = ssub.s32 128, 128
      %22 = vsyncadd [#allocation4], %s21
      %s24 = sshll.u32 %s1, 4
      %s25 = int_to_ptr.vmem [resolvable:$true] %s24
      %27 = dma.vmem_to_smem %s25, 128, [#allocation3], [#allocation4]
    $region9: #{mlp_forward.1} parent=1 // pred_fallthru
      _
    // Predicated region
    $region10: #{mlp_forward.1} parent=1 // pred_check
      _
    $region11: #{mlp_forward.1} parent=1 // pred_check_branch
      %29 = sbr.rel (0) target = $region13
    $region12: #{mlp_forward.1} parent=1 // pred_region
      %s31 = ssub.s32 16, 16
      %32 = vsyncadd [#allocation6], %s31
      %s34 = sshll.u32 %s2, 4
      %s35 = int_to_ptr.vmem [resolvable:$true] %s34
      %37 = dma.vmem_to_smem %s35, 16, [#allocation5], [#allocation6]
    $region13: #{mlp_forward.1} parent=1 // pred_fallthru
      _
    // Predicated region
    $region14: #{mlp_forward.1} parent=1 // pred_check
      _
    $region15: #{mlp_forward.1} parent=1 // pred_check_branch
      %39 = sbr.rel (0) target = $region17
    $region16: #{mlp_forward.1} parent=1 // pred_region
      %s41 = ssub.s32 64, 64
      %42 = vsyncadd [#allocation6], %s41
      %s44 = sshll.u32 %s3, 4
      %s45 = int_to_ptr.vmem [resolvable:$true] %s44
      %47 = dma.vmem_to_smem %s45, 64, [#allocation7], [#allocation6]
    $region17: #{mlp_forward.1} parent=1 // pred_fallthru
      _
    // Predicated region
    $region18: #{mlp_forward.1} parent=1 // pred_check
      _
    $region19: #{mlp_forward.1} parent=1 // pred_check_branch
      %49 = sbr.rel (0) target = $region21
    $region20: #{mlp_forward.1} parent=1 // pred_region
      %s51 = ssub.s32 16, 16
      %52 = vsyncadd [#allocation9], %s51
      %s54 = sshll.u32 %s4, 4
      %s55 = int_to_ptr.vmem [resolvable:$true] %s54
      %57 = dma.vmem_to_smem %s55, 16, [#allocation8], [#allocation9]
    $region21: #{mlp_forward.1} parent=1 // pred_fallthru
      _
    // Predicated region
    $region22: #{mlp_forward.1} parent=1 // pred_check
      _
    $region23: #{mlp_forward.1} parent=1 // pred_check_branch
      %59 = sbr.rel (0) target = $region25
    $region24: #{mlp_forward.1} parent=1 // pred_region
      %s61 = ssub.s32 16, 16
      %62 = vsyncadd [#allocation9], %s61
      %s64 = sshll.u32 %s5, 4
      %s65 = int_to_ptr.vmem [resolvable:$true] %s64
      %67 = dma.vmem_to_smem %s65, 16, [#allocation10], [#allocation9]
    $region25: #{mlp_forward.1} parent=1 // pred_fallthru
      _
    // Predicated region
    $region26: #{mlp_forward.1} parent=1 // pred_check
      _
    $region27: #{mlp_forward.1} parent=1 // pred_check_branch
      %69 = sbr.rel (0) target = $region29
    $region28: #{mlp_forward.1} parent=1 // pred_region
      _
    $region29: #{mlp_forward.1} parent=1 // pred_fallthru
      _
    // Predicated region
    $region30: #{mlp_forward.1} parent=1 // pred_check
      _
    $region31: #{mlp_forward.1} parent=1 // pred_check_branch
      %71 = sbr.rel (0) target = $region33
    $region32: #{mlp_forward.1} parent=1 // pred_region
      %72 = dma.done [#allocation4], 128
    $region33: #{mlp_forward.1} parent=1 // pred_fallthru
      _
    // Predicated region
    $region34: #{mlp_forward.1} parent=1 // pred_check
      _
    $region35: #{mlp_forward.1} parent=1 // pred_check_branch
      %74 = sbr.rel (0) target = $region37
    $region36: #{mlp_forward.1} parent=1 // pred_region
      %75 = dma.done [#allocation6], 16
    $region37: #{mlp_forward.1} parent=1 // pred_fallthru
      _
    // Predicated region
    $region38: #{mlp_forward.1} parent=1 // pred_check
      _
    $region39: #{mlp_forward.1} parent=1 // pred_check_branch
      %77 = sbr.rel (0) target = $region41
    $region40: #{mlp_forward.1} parent=1 // pred_region
      %78 = dma.done [#allocation6], 64
    $region41: #{mlp_forward.1} parent=1 // pred_fallthru
      _
    // Predicated region
    $region42: #{mlp_forward.1} parent=1 // pred_check
      _
    $region43: #{mlp_forward.1} parent=1 // pred_check_branch
      %80 = sbr.rel (0) target = $region45
    $region44: #{mlp_forward.1} parent=1 // pred_region
      %81 = dma.done [#allocation9], 16
    $region45: #{mlp_forward.1} parent=1 // pred_fallthru
      _
    // Predicated region
    $region46: #{mlp_forward.1} parent=1 // pred_check
      _
    $region47: #{mlp_forward.1} parent=1 // pred_check_branch
      %83 = sbr.rel (0) target = $region49
    $region48: #{mlp_forward.1} parent=1 // pred_region
      %84 = dma.done [#allocation9], 16
    $region49: #{mlp_forward.1} parent=1 // pred_fallthru
      _
    %85 = sfence
    %v86 = vld [vmem:[%s0] sm:$0x1]
    %s87 = scalar_lea.vmem %s0, 1
    %v88 = vld [vmem:[%s87] sm:$0x1]
    %s89 = scalar_lea.vmem %s0, 2
    %v90 = vld [vmem:[%s89] sm:$0x1]
    %s91 = scalar_lea.vmem %s0, 3
    %v92 = vld [vmem:[%s91] sm:$0x1]
    %s93 = scalar_lea.vmem %s0, 4
    %v94 = vld [vmem:[%s93] sm:$0x1]
    %s95 = scalar_lea.vmem %s0, 5
    %v96 = vld [vmem:[%s95] sm:$0x1]
    %s97 = scalar_lea.vmem %s0, 6
    %v98 = vld [vmem:[%s97] sm:$0x1]
    %s99 = scalar_lea.vmem %s0, 7
    %v100 = vld [vmem:[%s99] sm:$0x1]
    %s101 = sld [smem:[#allocation3]]
    %v102 = vstv %s101
    %v103 = vmul.f32 %v86, %v102
    %s104 = sld [smem:[#allocation3 + $0x1]]
    %v105 = vstv %s104
    %v106 = vmul.f32 %v88, %v105
    %v107 = vadd.f32 %v103, %v106
    %s108 = sld [smem:[#allocation3 + $0x2]]
    %v109 = vstv %s108
    %v110 = vmul.f32 %v90, %v109
    %v111 = vadd.f32 %v107, %v110
    %s112 = sld [smem:[#allocation3 + $0x3]]
    %v113 = vstv %s112
    %v114 = vmul.f32 %v92, %v113
    %v115 = vadd.f32 %v111, %v114
    %s116 = sld [smem:[#allocation3 + $0x4]]
    %v117 = vstv %s116
    %v118 = vmul.f32 %v94, %v117
    %v119 = vadd.f32 %v115, %v118
    %s120 = sld [smem:[#allocation3 + $0x5]]
    %v121 = vstv %s120
    %v122 = vmul.f32 %v96, %v121
    %v123 = vadd.f32 %v119, %v122
    %s124 = sld [smem:[#allocation3 + $0x6]]
    %v125 = vstv %s124
    %v126 = vmul.f32 %v98, %v125
    %v127 = vadd.f32 %v123, %v126
    %s128 = sld [smem:[#allocation3 + $0x7]]
    %v129 = vstv %s128
    %v130 = vmul.f32 %v100, %v129
    %v131 = vadd.f32 %v127, %v130
    %s132 = sld [smem:[#allocation5]]
    %v133 = vstv %s132
    %v134 = vadd.f32 %v131, %v133
    %v135 = vtanh.pop %v134
    %s136 = sld [smem:[#allocation3 + $0x80]]
    %v137 = vstv %s136
    %v138 = vmul.f32 %v86, %v137
    %s139 = sld [smem:[#allocation3 + $0x81]]
    %v140 = vstv %s139
    %v141 = vmul.f32 %v88, %v140
    %v142 = vadd.f32 %v138, %v141
    %s143 = sld [smem:[#allocation3 + $0x82]]
    %v144 = vstv %s143
    %v145 = vmul.f32 %v90, %v144
    %v146 = vadd.f32 %v142, %v145
    %s147 = sld [smem:[#allocation3 + $0x83]]
    %v148 = vstv %s147
    %v149 = vmul.f32 %v92, %v148
    %v150 = vadd.f32 %v146, %v149
    %s151 = sld [smem:[#allocation3 + $0x84]]
    %v152 = vstv %s151
    %v153 = vmul.f32 %v94, %v152
    %v154 = vadd.f32 %v150, %v153
    %s155 = sld [smem:[#allocation3 + $0x85]]
    %v156 = vstv %s155
    %v157 = vmul.f32 %v96, %v156
    %v158 = vadd.f32 %v154, %v157
    %s159 = sld [smem:[#allocation3 + $0x86]]
    %v160 = vstv %s159
    %v161 = vmul.f32 %v98, %v160
    %v162 = vadd.f32 %v158, %v161
    %s163 = sld [smem:[#allocation3 + $0x87]]
    %v164 = vstv %s163
    %v165 = vmul.f32 %v100, %v164
    %v166 = vadd.f32 %v162, %v165
    %s167 = sld [smem:[#allocation5 + $0x1]]
    %v168 = vstv %s167
    %v169 = vadd.f32 %v166, %v168
    %v170 = vtanh.pop %v169
    %s171 = sld [smem:[#allocation3 + $0x100]]
    %v172 = vstv %s171
    %v173 = vmul.f32 %v86, %v172
    %s174 = sld [smem:[#allocation3 + $0x101]]
    %v175 = vstv %s174
    %v176 = vmul.f32 %v88, %v175
    %v177 = vadd.f32 %v173, %v176
    %s178 = sld [smem:[#allocation3 + $0x102]]
    %v179 = vstv %s178
    %v180 = vmul.f32 %v90, %v179
    %v181 = vadd.f32 %v177, %v180
    %s182 = sld [smem:[#allocation3 + $0x103]]
    %v183 = vstv %s182
    %v184 = vmul.f32 %v92, %v183
    %v185 = vadd.f32 %v181, %v184
    %s186 = sld [smem:[#allocation3 + $0x104]]
    %v187 = vstv %s186
    %v188 = vmul.f32 %v94, %v187
    %v189 = vadd.f32 %v185, %v188
    %s190 = sld [smem:[#allocation3 + $0x105]]
    %v191 = vstv %s190
    %v192 = vmul.f32 %v96, %v191
    %v193 = vadd.f32 %v189, %v192
    %s194 = sld [smem:[#allocation3 + $0x106]]
    %v195 = vstv %s194
    %v196 = vmul.f32 %v98, %v195
    %v197 = vadd.f32 %v193, %v196
    %s198 = sld [smem:[#allocation3 + $0x107]]
    %v199 = vstv %s198
    %v200 = vmul.f32 %v100, %v199
    %v201 = vadd.f32 %v197, %v200
    %s202 = sld [smem:[#allocation5 + $0x2]]
    %v203 = vstv %s202
    %v204 = vadd.f32 %v201, %v203
    %v205 = vtanh.pop %v204
    %s206 = sld [smem:[#allocation3 + $0x180]]
    %v207 = vstv %s206
    %v208 = vmul.f32 %v86, %v207
    %s209 = sld [smem:[#allocation3 + $0x181]]
    %v210 = vstv %s209
    %v211 = vmul.f32 %v88, %v210
    %v212 = vadd.f32 %v208, %v211
    %s213 = sld [smem:[#allocation3 + $0x182]]
    %v214 = vstv %s213
    %v215 = vmul.f32 %v90, %v214
    %v216 = vadd.f32 %v212, %v215
    %s217 = sld [smem:[#allocation3 + $0x183]]
    %v218 = vstv %s217
    %v219 = vmul.f32 %v92, %v218
    %v220 = vadd.f32 %v216, %v219
    %s221 = sld [smem:[#allocation3 + $0x184]]
    %v222 = vstv %s221
    %v223 = vmul.f32 %v94, %v222
    %v224 = vadd.f32 %v220, %v223
    %s225 = sld [smem:[#allocation3 + $0x185]]
    %v226 = vstv %s225
    %v227 = vmul.f32 %v96, %v226
    %v228 = vadd.f32 %v224, %v227
    %s229 = sld [smem:[#allocation3 + $0x186]]
    %v230 = vstv %s229
    %v231 = vmul.f32 %v98, %v230
    %v232 = vadd.f32 %v228, %v231
    %s233 = sld [smem:[#allocation3 + $0x187]]
    %v234 = vstv %s233
    %v235 = vmul.f32 %v100, %v234
    %v236 = vadd.f32 %v232, %v235
    %s237 = sld [smem:[#allocation5 + $0x3]]
    %v238 = vstv %s237
    %v239 = vadd.f32 %v236, %v238
    %v240 = vtanh.pop %v239
    %s241 = sld [smem:[#allocation3 + $0x200]]
    %v242 = vstv %s241
    %v243 = vmul.f32 %v86, %v242
    %s244 = sld [smem:[#allocation3 + $0x201]]
    %v245 = vstv %s244
    %v246 = vmul.f32 %v88, %v245
    %v247 = vadd.f32 %v243, %v246
    %s248 = sld [smem:[#allocation3 + $0x202]]
    %v249 = vstv %s248
    %v250 = vmul.f32 %v90, %v249
    %v251 = vadd.f32 %v247, %v250
    %s252 = sld [smem:[#allocation3 + $0x203]]
    %v253 = vstv %s252
    %v254 = vmul.f32 %v92, %v253
    %v255 = vadd.f32 %v251, %v254
    %s256 = sld [smem:[#allocation3 + $0x204]]
    %v257 = vstv %s256
    %v258 = vmul.f32 %v94, %v257
    %v259 = vadd.f32 %v255, %v258
    %s260 = sld [smem:[#allocation3 + $0x205]]
    %v261 = vstv %s260
    %v262 = vmul.f32 %v96, %v261
    %v263 = vadd.f32 %v259, %v262
    %s264 = sld [smem:[#allocation3 + $0x206]]
    %v265 = vstv %s264
    %v266 = vmul.f32 %v98, %v265
    %v267 = vadd.f32 %v263, %v266
    %s268 = sld [smem:[#allocation3 + $0x207]]
    %v269 = vstv %s268
    %v270 = vmul.f32 %v100, %v269
    %v271 = vadd.f32 %v267, %v270
    %s272 = sld [smem:[#allocation5 + $0x4]]
    %v273 = vstv %s272
    %v274 = vadd.f32 %v271, %v273
    %v275 = vtanh.pop %v274
    %s276 = sld [smem:[#allocation3 + $0x280]]
    %v277 = vstv %s276
    %v278 = vmul.f32 %v86, %v277
    %s279 = sld [smem:[#allocation3 + $0x281]]
    %v280 = vstv %s279
    %v281 = vmul.f32 %v88, %v280
    %v282 = vadd.f32 %v278, %v281
    %s283 = sld [smem:[#allocation3 + $0x282]]
    %v284 = vstv %s283
    %v285 = vmul.f32 %v90, %v284
    %v286 = vadd.f32 %v282, %v285
    %s287 = sld [smem:[#allocation3 + $0x283]]
    %v288 = vstv %s287
    %v289 = vmul.f32 %v92, %v288
    %v290 = vadd.f32 %v286, %v289
    %s291 = sld [smem:[#allocation3 + $0x284]]
    %v292 = vstv %s291
    %v293 = vmul.f32 %v94, %v292
    %v294 = vadd.f32 %v290, %v293
    %s295 = sld [smem:[#allocation3 + $0x285]]
    %v296 = vstv %s295
    %v297 = vmul.f32 %v96, %v296
    %v298 = vadd.f32 %v294, %v297
    %s299 = sld [smem:[#allocation3 + $0x286]]
    %v300 = vstv %s299
    %v301 = vmul.f32 %v98, %v300
    %v302 = vadd.f32 %v298, %v301
    %s303 = sld [smem:[#allocation3 + $0x287]]
    %v304 = vstv %s303
    %v305 = vmul.f32 %v100, %v304
    %v306 = vadd.f32 %v302, %v305
    %s307 = sld [smem:[#allocation5 + $0x5]]
    %v308 = vstv %s307
    %v309 = vadd.f32 %v306, %v308
    %v310 = vtanh.pop %v309
    %s311 = sld [smem:[#allocation7]]
    %v312 = vstv %s311
    %v313 = vmul.f32 %v135, %v312
    %s314 = sld [smem:[#allocation7 + $0x1]]
    %v315 = vstv %s314
    %v316 = vmul.f32 %v170, %v315
    %v317 = vadd.f32 %v313, %v316
    %s318 = sld [smem:[#allocation7 + $0x2]]
    %v319 = vstv %s318
    %v320 = vmul.f32 %v205, %v319
    %v321 = vadd.f32 %v317, %v320
    %s322 = sld [smem:[#allocation7 + $0x3]]
    %v323 = vstv %s322
    %v324 = vmul.f32 %v240, %v323
    %v325 = vadd.f32 %v321, %v324
    %s326 = sld [smem:[#allocation7 + $0x4]]
    %v327 = vstv %s326
    %v328 = vmul.f32 %v275, %v327
    %v329 = vadd.f32 %v325, %v328
    %s330 = sld [smem:[#allocation7 + $0x5]]
    %v331 = vstv %s330
    %v332 = vmul.f32 %v310, %v331
    %v333 = vadd.f32 %v329, %v332
    %s334 = sld [smem:[#allocation8]]
    %v335 = vstv %s334
    %v336 = vadd.f32 %v333, %v335
    %v337 = vtanh.pop %v336
    %s338 = sld [smem:[#allocation7 + $0x80]]
    %v339 = vstv %s338
    %v340 = vmul.f32 %v135, %v339
    %s341 = sld [smem:[#allocation7 + $0x81]]
    %v342 = vstv %s341
    %v343 = vmul.f32 %v170, %v342
    %v344 = vadd.f32 %v340, %v343
    %s345 = sld [smem:[#allocation7 + $0x82]]
    %v346 = vstv %s345
    %v347 = vmul.f32 %v205, %v346
    %v348 = vadd.f32 %v344, %v347
    %s349 = sld [smem:[#allocation7 + $0x83]]
    %v350 = vstv %s349
    %v351 = vmul.f32 %v240, %v350
    %v352 = vadd.f32 %v348, %v351
    %s353 = sld [smem:[#allocation7 + $0x84]]
    %v354 = vstv %s353
    %v355 = vmul.f32 %v275, %v354
    %v356 = vadd.f32 %v352, %v355
    %s357 = sld [smem:[#allocation7 + $0x85]]
    %v358 = vstv %s357
    %v359 = vmul.f32 %v310, %v358
    %v360 = vadd.f32 %v356, %v359
    %s361 = sld [smem:[#allocation8 + $0x1]]
    %v362 = vstv %s361
    %v363 = vadd.f32 %v360, %v362
    %v364 = vtanh.pop %v363
    %s365 = sld [smem:[#allocation7 + $0x100]]
    %v366 = vstv %s365
    %v367 = vmul.f32 %v135, %v366
    %s368 = sld [smem:[#allocation7 + $0x101]]
    %v369 = vstv %s368
    %v370 = vmul.f32 %v170, %v369
    %v371 = vadd.f32 %v367, %v370
    %s372 = sld [smem:[#allocation7 + $0x102]]
    %v373 = vstv %s372
    %v374 = vmul.f32 %v205, %v373
    %v375 = vadd.f32 %v371, %v374
    %s376 = sld [smem:[#allocation7 + $0x103]]
    %v377 = vstv %s376
    %v378 = vmul.f32 %v240, %v377
    %v379 = vadd.f32 %v375, %v378
    %s380 = sld [smem:[#allocation7 + $0x104]]
    %v381 = vstv %s380
    %v382 = vmul.f32 %v275, %v381
    %v383 = vadd.f32 %v379, %v382
    %s384 = sld [smem:[#allocation7 + $0x105]]
    %v385 = vstv %s384
    %v386 = vmul.f32 %v310, %v385
    %v387 = vadd.f32 %v383, %v386
    %s388 = sld [smem:[#allocation8 + $0x2]]
    %v389 = vstv %s388
    %v390 = vadd.f32 %v387, %v389
    %v391 = vtanh.pop %v390
    %s392 = sld [smem:[#allocation7 + $0x180]]
    %v393 = vstv %s392
    %v394 = vmul.f32 %v135, %v393
    %s395 = sld [smem:[#allocation7 + $0x181]]
    %v396 = vstv %s395
    %v397 = vmul.f32 %v170, %v396
    %v398 = vadd.f32 %v394, %v397
    %s399 = sld [smem:[#allocation7 + $0x182]]
    %v400 = vstv %s399
    %v401 = vmul.f32 %v205, %v400
    %v402 = vadd.f32 %v398, %v401
    %s403 = sld [smem:[#allocation7 + $0x183]]
    %v404 = vstv %s403
    %v405 = vmul.f32 %v240, %v404
    %v406 = vadd.f32 %v402, %v405
    %s407 = sld [smem:[#allocation7 + $0x184]]
    %v408 = vstv %s407
    %v409 = vmul.f32 %v275, %v408
    %v410 = vadd.f32 %v406, %v409
    %s411 = sld [smem:[#allocation7 + $0x185]]
    %v412 = vstv %s411
    %v413 = vmul.f32 %v310, %v412
    %v414 = vadd.f32 %v410, %v413
    %s415 = sld [smem:[#allocation8 + $0x3]]
    %v416 = vstv %s415
    %v417 = vadd.f32 %v414, %v416
    %v418 = vtanh.pop %v417
    %s419 = sld [smem:[#allocation10]]
    %v420 = vstv %s419
    %v421 = vmul.f32 %v337, %v420
    %s422 = sld [smem:[#allocation10 + $0x1]]
    %v423 = vstv %s422
    %v424 = vmul.f32 %v364, %v423
    %v425 = vadd.f32 %v421, %v424
    %s426 = sld [smem:[#allocation10 + $0x2]]
    %v427 = vstv %s426
    %v428 = vmul.f32 %v391, %v427
    %v429 = vadd.f32 %v425, %v428
    %s430 = sld [smem:[#allocation10 + $0x3]]
    %v431 = vstv %s430
    %v432 = vmul.f32 %v418, %v431
    %v433 = vadd.f32 %v429, %v432
    %s434 = sld [smem:[#allocation2]]
    %v435 = vstv %s434
    %v436 = vadd.f32 %v433, %v435
    %v437 = vtanh.pop %v436
    %v438 = vmul.f32 %v437, 0.5
    %v439 = vadd.f32 %v438, 0.5
    %440 = vst [vmem:[%s7] sm:$0x1] %v439
    // Predicated region
    $region50: #{mlp_forward.1} parent=1 // pred_check
      _
    $region51: #{mlp_forward.1} parent=1 // pred_check_branch
      %442 = sbr.rel (0) target = $region53
    $region52: #{mlp_forward.1} parent=1 // pred_region
      _
    $region53: #{mlp_forward.1} parent=1 // pred_fallthru
      _
    // Predicated region
    $region54: #{mlp_forward.1} parent=1 // pred_check
      _
    $region55: #{mlp_forward.1} parent=1 // pred_check_branch
      %444 = sbr.rel (0) target = $region57
    $region56: #{mlp_forward.1} parent=1 // pred_region
      _
    $region57: #{mlp_forward.1} parent=1 // pred_fallthru
      _
    %445 = vsyncpa [#allocation4], 1
    %446 = vsyncpa [#allocation6], 1
    %447 = vsyncpa [#allocation9], 1

</llo_original>
